<compile_context>
chip_gen: v6e
topology: v6e:2x2x1
jax: 0.10.0
libtpu: 0.0.40
codegen_flags: <defaults>
</compile_context>

<pallas_src>
import functools
import math

import jax
import jax.numpy as jnp
from jax.experimental import pallas as pl
from jax.experimental.pallas import tpu as pltpu

_BN_EPS = 1e-5


# ---------------------------------------------------------------------------
# Fused kernel: [Linear + BatchNorm1d(train) + ReLU] x num_layers
# ---------------------------------------------------------------------------
@functools.lru_cache(maxsize=None)
def _make_pblock_kernel(num_layers):
    def kernel(x_ref, *refs):
        # refs = [w0, b0, g0, beta0, w1, b1, g1, beta1, ..., out_ref]
        out_ref = refs[-1]
        p = refs[:-1]
        x = x_ref[...]                                     # (M, iu) f32
        for layer in range(num_layers):
            w = p[4 * layer][...]                          # (ux, uy) pre-transposed
            b = p[4 * layer + 1][...]                      # (1, uy)
            gamma = p[4 * layer + 2][...]                  # (1, uy)
            beta = p[4 * layer + 3][...]                   # (1, uy)

            # Linear (MXU), lane-dense output.
            h = jnp.dot(x, w, preferred_element_type=jnp.float32) + b   # (M, uy)

            # BatchNorm1d, training-mode batch statistics (biased variance),
            # per feature channel over all M rows.
            mean = jnp.mean(h, axis=0, keepdims=True)      # (1, uy)
            xc = h - mean
            var = jnp.mean(xc * xc, axis=0, keepdims=True) # (1, uy)
            scale = jax.lax.rsqrt(var + _BN_EPS) * gamma   # (1, uy), EUP rsqrt

            # ReLU.
            x = jnp.maximum(xc * scale + beta, 0.0)
        out_ref[...] = x

    return kernel


def pblock_forward_2d(x2d, flat_params, num_layers, out_dim):
    """x2d: (M, iu) f32 ; flat_params: [wT, b, gamma, beta] * num_layers."""
    M = x2d.shape[0]
    vmem = pl.BlockSpec(memory_space=pltpu.MemorySpace.VMEM)
    return pl.pallas_call(
        _make_pblock_kernel(num_layers),
        out_shape=jax.ShapeDtypeStruct((M, out_dim), jnp.float32),
        in_specs=[vmem] * (1 + len(flat_params)),
        out_specs=vmem,
    )(x2d, *flat_params)


# ---------------------------------------------------------------------------
# PBlock module (parameters + forward wrapper)
# ---------------------------------------------------------------------------
class PBlock:
    def __init__(self, key, iu, *units, should_perm):
        self.should_perm = should_perm
        self.params = []          # list of (wT (ux,uy), b (uy,), gamma (uy,), beta (uy,))
        ux = iu
        keys = jax.random.split(key, max(1, len(units)))
        for k, uy in zip(keys, units):
            kw, kb, kg, kbe = jax.random.split(k, 4)
            bound = 1.0 / math.sqrt(ux)
            # torch nn.Linear default init: U(-1/sqrt(fan_in), 1/sqrt(fan_in)).
            w = jax.random.uniform(kw, (uy, ux), jnp.float32, -bound, bound)
            b = jax.random.uniform(kb, (uy,), jnp.float32, -bound, bound)
            # BatchNorm affine params (torch defaults are ones/zeros; perturbed
            # here only so the numerical check exercises gamma/beta).
            gamma = 1.0 + 0.05 * jax.random.normal(kg, (uy,), jnp.float32)
            beta = 0.05 * jax.random.normal(kbe, (uy,), jnp.float32)
            self.params.append((w.T, b, gamma, beta))      # store weight pre-transposed
            ux = uy
        self.out_dim = ux
        self.num_layers = len(units)
        # Flat, kernel-ready parameter list (biases / BN params as (1, C) rows).
        self.flat_params = []
        for (wT, b, gamma, beta) in self.params:
            self.flat_params += [wT, b.reshape(1, -1), gamma.reshape(1, -1),
                                 beta.reshape(1, -1)]

    def forward(self, x):
        x = x.astype(jnp.float32)
        if not self.should_perm:
            assert x.ndim == 2, "should_perm=False implies a 2-D (batch, features) input"
        lead = x.shape[:-1]
        # Flattening leading dims is exactly equivalent to torch's
        # permute -> BatchNorm1d -> permute (per-channel stats over batch*length).
        x2d = x.reshape(-1, x.shape[-1])
        y2d = pblock_forward_2d(x2d, self.flat_params, self.num_layers, self.out_dim)
        return y2d.reshape(*lead, self.out_dim)


# ---------------------------------------------------------------------------
# Pure-JAX reference mirroring the torch module literally (with permutes).
# ---------------------------------------------------------------------------
def reference_forward(params, x, should_perm, eps=_BN_EPS):
    x = x.astype(jnp.float32)
    for (wT, b, gamma, beta) in params:
        x = x @ wT + b                                      # Linear
        if should_perm:
            x = jnp.transpose(x, (0, 2, 1))                 # (B, C, L)
            mean = jnp.mean(x, axis=(0, 2), keepdims=True)
            var = jnp.mean((x - mean) ** 2, axis=(0, 2), keepdims=True)
            x = (x - mean) / jnp.sqrt(var + eps)
            x = x * gamma[None, :, None] + beta[None, :, None]
            x = jnp.transpose(x, (0, 2, 1))                 # back to (B, L, C)
        else:
            mean = jnp.mean(x, axis=0, keepdims=True)
            var = jnp.mean((x - mean) ** 2, axis=0, keepdims=True)
            x = (x - mean) / jnp.sqrt(var + eps) * gamma + beta
        x = jnp.maximum(x, 0.0)                             # ReLU
    return x


if __name__ == "__main__":
    key = jax.random.PRNGKey(0)
    k_params, k_x, k_x2 = jax.random.split(key, 3)

    # Small shapes consistent with the module: (batch=2, seq=16, hidden=32),
    # units=(64, 128).
    B, N, IU = 2, 16, 32
    UNITS = (64, 128)

    # 3-D / should_perm=True path (the pointnet-style usage).
    block = PBlock(k_params, IU, *UNITS, should_perm=True)
    x = jax.random.normal(k_x, (B, N, IU), dtype=jnp.float32)
    y = block.forward(x)
    jax.block_until_ready(y)

    y_ref = reference_forward(block.params, x, should_perm=True)
    assert y.shape == (B, N, UNITS[-1]), (y.shape, (B, N, UNITS[-1]))
    assert jnp.allclose(y, y_ref, atol=1e-3, rtol=1e-3), float(jnp.max(jnp.abs(y - y_ref)))

    # 2-D / should_perm=False path (BatchNorm1d over the batch dim).
    block2 = PBlock(k_params, IU, *UNITS, should_perm=False)
    x2 = jax.random.normal(k_x2, (8, IU), dtype=jnp.float32)
    y2 = block2.forward(x2)
    jax.block_until_ready(y2)
    y2_ref = reference_forward(block2.params, x2, should_perm=False)
    assert y2.shape == (8, UNITS[-1])
    assert jnp.allclose(y2, y2_ref, atol=1e-3, rtol=1e-3), float(jnp.max(jnp.abs(y2 - y2_ref)))

    print("KERNEL_OK")
</pallas_src>

<mosaic_0001>
module attributes {stable_mosaic.version = 11 : i64} {
  func.func @kernel(%arg0: memref<32x32xf32, #tpu.memory_space<vmem>>, %arg1: memref<32x64xf32, #tpu.memory_space<vmem>>, %arg2: memref<1x64xf32, #tpu.memory_space<vmem>>, %arg3: memref<1x64xf32, #tpu.memory_space<vmem>>, %arg4: memref<1x64xf32, #tpu.memory_space<vmem>>, %arg5: memref<64x128xf32, #tpu.memory_space<vmem>>, %arg6: memref<1x128xf32, #tpu.memory_space<vmem>>, %arg7: memref<1x128xf32, #tpu.memory_space<vmem>>, %arg8: memref<1x128xf32, #tpu.memory_space<vmem>>, %arg9: memref<32x128xf32, #tpu.memory_space<vmem>>) attributes {dimension_semantics = [], scalar_prefetch = 0 : i64, scratch_operands = 0 : i64, tpu.core_type = #tpu.core_type<tc>} {
    %c0 = arith.constant 0 : index
    %c0_0 = arith.constant 0 : index
    %0 = vector.load %arg0[%c0, %c0_0] : memref<32x32xf32, #tpu.memory_space<vmem>>, vector<32x32xf32>
    %c0_1 = arith.constant 0 : index
    %c0_2 = arith.constant 0 : index
    %1 = vector.load %arg1[%c0_1, %c0_2] : memref<32x64xf32, #tpu.memory_space<vmem>>, vector<32x64xf32>
    %c0_3 = arith.constant 0 : index
    %c0_4 = arith.constant 0 : index
    %2 = vector.load %arg2[%c0_3, %c0_4] : memref<1x64xf32, #tpu.memory_space<vmem>>, vector<1x64xf32>
    %c0_5 = arith.constant 0 : index
    %c0_6 = arith.constant 0 : index
    %3 = vector.load %arg3[%c0_5, %c0_6] : memref<1x64xf32, #tpu.memory_space<vmem>>, vector<1x64xf32>
    %c0_7 = arith.constant 0 : index
    %c0_8 = arith.constant 0 : index
    %4 = vector.load %arg4[%c0_7, %c0_8] : memref<1x64xf32, #tpu.memory_space<vmem>>, vector<1x64xf32>
    %cst = arith.constant dense<0.000000e+00> : vector<32x64xf32>
    %5 = tpu.matmul %0, %1, %cst {dimension_numbers = #tpu.dot_dimension_numbers<[1], [0], [0], [1], [0, 0, 1, 1], [], []>} : vector<32x32xf32>, vector<32x64xf32>, vector<32x64xf32> -> vector<32x64xf32>
    %6 = vector.broadcast %2 : vector<1x64xf32> to vector<32x64xf32>
    %7 = arith.addf %5, %6 : vector<32x64xf32>
    %cst_9 = arith.constant dense<0.000000e+00> : vector<64xf32>
    %8 = vector.multi_reduction <add>, %7, %cst_9 [0] : vector<32x64xf32> to vector<64xf32>
    %9 = vector.shape_cast %8 : vector<64xf32> to vector<1x64xf32>
    %cst_10 = arith.constant 3.200000e+01 : f32
    %10 = vector.broadcast %cst_10 : f32 to vector<1x64xf32>
    %11 = arith.divf %9, %10 : vector<1x64xf32>
    %12 = vector.broadcast %11 : vector<1x64xf32> to vector<32x64xf32>
    %13 = arith.subf %7, %12 : vector<32x64xf32>
    %14 = arith.mulf %13, %13 : vector<32x64xf32>
    %cst_11 = arith.constant dense<0.000000e+00> : vector<64xf32>
    %15 = vector.multi_reduction <add>, %14, %cst_11 [0] : vector<32x64xf32> to vector<64xf32>
    %16 = vector.shape_cast %15 : vector<64xf32> to vector<1x64xf32>
    %cst_12 = arith.constant 3.200000e+01 : f32
    %17 = vector.broadcast %cst_12 : f32 to vector<1x64xf32>
    %18 = arith.divf %16, %17 : vector<1x64xf32>
    %cst_13 = arith.constant 9.99999974E-6 : f32
    %19 = vector.broadcast %cst_13 : f32 to vector<1x64xf32>
    %20 = arith.addf %18, %19 : vector<1x64xf32>
    %21 = math.rsqrt %20 : vector<1x64xf32>
    %22 = arith.mulf %21, %3 : vector<1x64xf32>
    %23 = vector.broadcast %22 : vector<1x64xf32> to vector<32x64xf32>
    %24 = arith.mulf %13, %23 : vector<32x64xf32>
    %25 = vector.broadcast %4 : vector<1x64xf32> to vector<32x64xf32>
    %26 = arith.addf %24, %25 : vector<32x64xf32>
    %cst_14 = arith.constant 0.000000e+00 : f32
    %27 = vector.broadcast %cst_14 : f32 to vector<32x64xf32>
    %28 = arith.maximumf %26, %27 : vector<32x64xf32>
    %c0_15 = arith.constant 0 : index
    %c0_16 = arith.constant 0 : index
    %29 = vector.load %arg5[%c0_15, %c0_16] : memref<64x128xf32, #tpu.memory_space<vmem>>, vector<64x128xf32>
    %c0_17 = arith.constant 0 : index
    %c0_18 = arith.constant 0 : index
    %30 = vector.load %arg6[%c0_17, %c0_18] : memref<1x128xf32, #tpu.memory_space<vmem>>, vector<1x128xf32>
    %c0_19 = arith.constant 0 : index
    %c0_20 = arith.constant 0 : index
    %31 = vector.load %arg7[%c0_19, %c0_20] : memref<1x128xf32, #tpu.memory_space<vmem>>, vector<1x128xf32>
    %c0_21 = arith.constant 0 : index
    %c0_22 = arith.constant 0 : index
    %32 = vector.load %arg8[%c0_21, %c0_22] : memref<1x128xf32, #tpu.memory_space<vmem>>, vector<1x128xf32>
    %cst_23 = arith.constant dense<0.000000e+00> : vector<32x128xf32>
    %33 = tpu.matmul %28, %29, %cst_23 {dimension_numbers = #tpu.dot_dimension_numbers<[1], [0], [0], [1], [0, 0, 1, 1], [], []>} : vector<32x64xf32>, vector<64x128xf32>, vector<32x128xf32> -> vector<32x128xf32>
    %34 = vector.broadcast %30 : vector<1x128xf32> to vector<32x128xf32>
    %35 = arith.addf %33, %34 : vector<32x128xf32>
    %cst_24 = arith.constant dense<0.000000e+00> : vector<128xf32>
    %36 = vector.multi_reduction <add>, %35, %cst_24 [0] : vector<32x128xf32> to vector<128xf32>
    %37 = vector.shape_cast %36 : vector<128xf32> to vector<1x128xf32>
    %cst_25 = arith.constant 3.200000e+01 : f32
    %38 = vector.broadcast %cst_25 : f32 to vector<1x128xf32>
    %39 = arith.divf %37, %38 : vector<1x128xf32>
    %40 = vector.broadcast %39 : vector<1x128xf32> to vector<32x128xf32>
    %41 = arith.subf %35, %40 : vector<32x128xf32>
    %42 = arith.mulf %41, %41 : vector<32x128xf32>
    %cst_26 = arith.constant dense<0.000000e+00> : vector<128xf32>
    %43 = vector.multi_reduction <add>, %42, %cst_26 [0] : vector<32x128xf32> to vector<128xf32>
    %44 = vector.shape_cast %43 : vector<128xf32> to vector<1x128xf32>
    %cst_27 = arith.constant 3.200000e+01 : f32
    %45 = vector.broadcast %cst_27 : f32 to vector<1x128xf32>
    %46 = arith.divf %44, %45 : vector<1x128xf32>
    %cst_28 = arith.constant 9.99999974E-6 : f32
    %47 = vector.broadcast %cst_28 : f32 to vector<1x128xf32>
    %48 = arith.addf %46, %47 : vector<1x128xf32>
    %49 = math.rsqrt %48 : vector<1x128xf32>
    %50 = arith.mulf %49, %31 : vector<1x128xf32>
    %51 = vector.broadcast %50 : vector<1x128xf32> to vector<32x128xf32>
    %52 = arith.mulf %41, %51 : vector<32x128xf32>
    %53 = vector.broadcast %32 : vector<1x128xf32> to vector<32x128xf32>
    %54 = arith.addf %52, %53 : vector<32x128xf32>
    %cst_29 = arith.constant 0.000000e+00 : f32
    %55 = vector.broadcast %cst_29 : f32 to vector<32x128xf32>
    %56 = arith.maximumf %54, %55 : vector<32x128xf32>
    %c0_30 = arith.constant 0 : index
    %c0_31 = arith.constant 0 : index
    %57 = vector.load %arg9[%c0_30, %c0_31] : memref<32x128xf32, #tpu.memory_space<vmem>>, vector<32x128xf32>
    tpu.vector_store %arg9[%c0_30, %c0_31], %56 {strides = array<i32>} : memref<32x128xf32, #tpu.memory_space<vmem>>, vector<32x128xf32>,
    return
  }
}

</mosaic_0001>

<llo_original>
// kernel: tpu_custom_call.1
$region0: #{tpu_custom_call.1}
  #allocation0 [shape = 'u32[]', space=smem, size = 0x4, offset = 0x4, fixed_abs, tag = 'smem constant byte address 0x4 - core index']
  #allocation1 [shape = 'u32[144,128]{1,0:T(1,128)}', space=vmem, size = 0x12000, scoped, tag = 'internal scratch']
  %s0 = inlined_call_operand.hbm [shape: f32[32,32], index: 0, kind: input, shape index: {}]
  %s1 = inlined_call_operand.hbm [shape: f32[32,64], index: 1, kind: input, shape index: {}]
  %s2 = inlined_call_operand.vmem [shape: f32[1,64], index: 2, kind: input, shape index: {}]
  %s3 = inlined_call_operand.vmem [shape: f32[1,64], index: 3, kind: input, shape index: {}]
  %s4 = inlined_call_operand.vmem [shape: f32[1,64], index: 4, kind: input, shape index: {}]
  %s5 = inlined_call_operand.hbm [shape: f32[64,128], index: 5, kind: input, shape index: {}]
  %s6 = inlined_call_operand.vmem [shape: f32[1,128], index: 6, kind: input, shape index: {}]
  %s7 = inlined_call_operand.vmem [shape: f32[1,128], index: 7, kind: input, shape index: {}]
  %s8 = inlined_call_operand.vmem [shape: f32[1,128], index: 8, kind: input, shape index: {}]
  %s9 = inlined_call_operand.hbm [shape: f32[32,128], index: 9, kind: output, shape index: {}]
  %s10 = sld [smem:[#allocation0]]
  $region58: #{tpu_custom_call.1} parent=0
    _
  %s12 = ssub.s32 1, %s10
  %s13 = scalar_select 0, %s12, %s10
  $region1: #{tpu_custom_call.1} parent=0
    #allocation2 [shape = 'u8[16384]{0}', space=vmem, size = 0x4000, scoped, tag = 'input window, operand 0, single buffered']
    #allocation3 [shape = 's32[1]{0}', space=sflag, size = 0x4, scoped, tag = 'scoped memory for tpu_custom_call.1']
    #allocation4 [shape = 's32[1]{0}', space=sflag, size = 0x4, scoped, tag = 'scoped memory for tpu_custom_call.1']
    #allocation5 [shape = 'u8[16384]{0}', space=vmem, size = 0x4000, scoped, tag = 'input window, operand 1, single buffered']
    #allocation6 [shape = 's32[1]{0}', space=sflag, size = 0x4, scoped, tag = 'scoped memory for tpu_custom_call.1']
    #allocation7 [shape = 'u8[32768]{0}', space=vmem, size = 0x8000, scoped, tag = 'input window, operand 5, single buffered']
    #allocation8 [shape = 'u8[16384]{0}', space=vmem, size = 0x4000, scoped, tag = 'output window, operand 0, single buffered']
    %14 = vsyncpa [#allocation3], 0
    %15 = vsyncpa [#allocation6], 0
    %16 = vsyncpa [#allocation4], 0
    // Predicated region
    $region2: #{tpu_custom_call.1} parent=1 // pred_check
      _
    $region3: #{tpu_custom_call.1} parent=1 // pred_check_branch
      %18 = sbr.rel (0) target = $region5
    $region4: #{tpu_custom_call.1} parent=1 // pred_region
      %s20 = ssub.s32 512, 512
      %21 = vsyncadd [#allocation3], %s20
      %s22 = sshll.u32 [#allocation2], 4
      %s23 = int_to_ptr.vmem [resolvable:$true] %s22
      %28 = dma.hbm_to_vmem [thread:$0]  %s0, 512, %s23, [#allocation3], 128, 128, 8
    $region5: #{tpu_custom_call.1} parent=1 // pred_fallthru
      _
    // Predicated region
    $region6: #{tpu_custom_call.1} parent=1 // pred_check
      _
    $region7: #{tpu_custom_call.1} parent=1 // pred_check_branch
      %30 = sbr.rel (0) target = $region9
    $region8: #{tpu_custom_call.1} parent=1 // pred_region
      %s32 = ssub.s32 512, 512
      %33 = vsyncadd [#allocation6], %s32
      %s34 = sshll.u32 [#allocation5], 4
      %s35 = int_to_ptr.vmem [resolvable:$true] %s34
      %40 = dma.hbm_to_vmem [thread:$0]  %s1, 512, %s35, [#allocation6], 128, 128, 8
    $region9: #{tpu_custom_call.1} parent=1 // pred_fallthru
      _
    // Predicated region
    $region10: #{tpu_custom_call.1} parent=1 // pred_check
      _
    $region11: #{tpu_custom_call.1} parent=1 // pred_check_branch
      %42 = sbr.rel (0) target = $region13
    $region12: #{tpu_custom_call.1} parent=1 // pred_region
      _
    $region13: #{tpu_custom_call.1} parent=1 // pred_fallthru
      _
    // Predicated region
    $region14: #{tpu_custom_call.1} parent=1 // pred_check
      _
    $region15: #{tpu_custom_call.1} parent=1 // pred_check_branch
      %44 = sbr.rel (0) target = $region17
    $region16: #{tpu_custom_call.1} parent=1 // pred_region
      _
    $region17: #{tpu_custom_call.1} parent=1 // pred_fallthru
      _
    // Predicated region
    $region18: #{tpu_custom_call.1} parent=1 // pred_check
      _
    $region19: #{tpu_custom_call.1} parent=1 // pred_check_branch
      %46 = sbr.rel (0) target = $region21
    $region20: #{tpu_custom_call.1} parent=1 // pred_region
      _
    $region21: #{tpu_custom_call.1} parent=1 // pred_fallthru
      _
    // Predicated region
    $region22: #{tpu_custom_call.1} parent=1 // pred_check
      _
    $region23: #{tpu_custom_call.1} parent=1 // pred_check_branch
      %48 = sbr.rel (0) target = $region25
    $region24: #{tpu_custom_call.1} parent=1 // pred_region
      %s50 = ssub.s32 1024, 1024
      %51 = vsyncadd [#allocation6], %s50
      %s52 = sshll.u32 [#allocation7], 4
      %s53 = int_to_ptr.vmem [resolvable:$true] %s52
      %58 = dma.hbm_to_vmem [thread:$0]  %s5, 1024, %s53, [#allocation6], 128, 128, 8
    $region25: #{tpu_custom_call.1} parent=1 // pred_fallthru
      _
    // Predicated region
    $region26: #{tpu_custom_call.1} parent=1 // pred_check
      _
    $region27: #{tpu_custom_call.1} parent=1 // pred_check_branch
      %60 = sbr.rel (0) target = $region29
    $region28: #{tpu_custom_call.1} parent=1 // pred_region
      _
    $region29: #{tpu_custom_call.1} parent=1 // pred_fallthru
      _
    // Predicated region
    $region30: #{tpu_custom_call.1} parent=1 // pred_check
      _
    $region31: #{tpu_custom_call.1} parent=1 // pred_check_branch
      %62 = sbr.rel (0) target = $region33
    $region32: #{tpu_custom_call.1} parent=1 // pred_region
      _
    $region33: #{tpu_custom_call.1} parent=1 // pred_fallthru
      _
    // Predicated region
    $region34: #{tpu_custom_call.1} parent=1 // pred_check
      _
    $region35: #{tpu_custom_call.1} parent=1 // pred_check_branch
      %64 = sbr.rel (0) target = $region37
    $region36: #{tpu_custom_call.1} parent=1 // pred_region
      _
    $region37: #{tpu_custom_call.1} parent=1 // pred_fallthru
      _
    // Predicated region
    $region38: #{tpu_custom_call.1} parent=1 // pred_check
      _
    $region39: #{tpu_custom_call.1} parent=1 // pred_check_branch
      %66 = sbr.rel (0) target = $region41
    $region40: #{tpu_custom_call.1} parent=1 // pred_region
      %67 = dma.done [#allocation3], 512
    $region41: #{tpu_custom_call.1} parent=1 // pred_fallthru
      _
    // Predicated region
    $region42: #{tpu_custom_call.1} parent=1 // pred_check
      _
    $region43: #{tpu_custom_call.1} parent=1 // pred_check_branch
      %69 = sbr.rel (0) target = $region45
    $region44: #{tpu_custom_call.1} parent=1 // pred_region
      %70 = dma.done [#allocation6], 512
    $region45: #{tpu_custom_call.1} parent=1 // pred_fallthru
      _
    // Predicated region
    $region46: #{tpu_custom_call.1} parent=1 // pred_check
      _
    $region47: #{tpu_custom_call.1} parent=1 // pred_check_branch
      %72 = sbr.rel (0) target = $region49
    $region48: #{tpu_custom_call.1} parent=1 // pred_region
      %73 = dma.done [#allocation6], 1024
    $region49: #{tpu_custom_call.1} parent=1 // pred_fallthru
      _
    %v74 = vld [vmem:[#allocation2] sm:$0xff]
    %v75 = vld [vmem:[#allocation2 + $0x8] sm:$0xff]
    %v76 = vld [vmem:[#allocation2 + $0x10] sm:$0xff]
    %v77 = vld [vmem:[#allocation2 + $0x18] sm:$0xff]
    %v78 = vld [vmem:[#allocation5] sm:$0xff]
    %v79 = vld [vmem:[#allocation5 + $0x8] sm:$0xff]
    %v80 = vld [vmem:[#allocation5 + $0x10] sm:$0xff]
    %v81 = vld [vmem:[#allocation5 + $0x18] sm:$0xff]
    %v82 = vld [vmem:[%s2] sm:$0x1]
    %v83 = vld [vmem:[%s3] sm:$0x1]
    %v84 = vld [vmem:[%s4] sm:$0x1]
    %v86 = vlaneseq
    %v87 = vshrl.u32 %v86, 7
    %v88 = vsub.s32 0, %v87
    %v89 = vrot.slane %v82, %v88
    %vm91 = vcmask 261120
    %v93 = vsel %vm91, %v74, 0
    %v96 = vsel %vm91, %v75, 0
    %v99 = vsel %vm91, %v76, 0
    %v102 = vsel %vm91, %v77, 0
    %104 = vmatprep.subr.mxu0 0.0
    %105 = vmatpush1.msra.mxu0 0.0
    %106 = vmatprep.subr.mxu0 0.0
    %107 = vmatpush1.msra.mxu0 0.0
    %108 = vmatprep.subr.mxu0 0.0
    %109 = vmatpush1.msra.mxu0 0.0
    %110 = vmatprep.subr.mxu0 0.0
    %111 = vmatpush1.msra.mxu0 0.0
    %112 = vmatprep.subr.mxu0 0.0
    %113 = vmatpush1.msra.mxu0 0.0
    %114 = vmatprep.subr.mxu0 0.0
    %115 = vmatpush1.msra.mxu0 0.0
    %116 = vmatprep.subr.mxu0 0.0
    %117 = vmatpush1.msra.mxu0 0.0
    %118 = vmatprep.subr.mxu0 0.0
    %119 = vmatpush1.msra.mxu0 0.0
    %120 = vmatprep.subr.mxu0 0.0
    %121 = vmatpush1.msra.mxu0 0.0
    %122 = vmatprep.subr.mxu0 0.0
    %123 = vmatpush1.msra.mxu0 0.0
    %124 = vmatprep.subr.mxu0 0.0
    %125 = vmatpush1.msra.mxu0 0.0
    %126 = vmatprep.subr.mxu0 0.0
    %127 = vmatpush1.msra.mxu0 0.0
    %128 = vmatprep.subr.mxu0 0.0
    %129 = vmatpush1.msra.mxu0 %v81
    %130 = vmatprep.subr.mxu0 0.0
    %131 = vmatpush1.msra.mxu0 %v80
    %132 = vmatprep.subr.mxu0 0.0
    %133 = vmatpush1.msra.mxu0 %v79
    %134 = vmatprep.subr.mxu0 0.0
    %135 = vmatpush1.msra.mxu0 %v78
    %136 = vmatprep.subr.mxu0 0.0
    %137 = vmatpush2.msra.mxu0 0.0
    %138 = vmatprep.subr.mxu0 0.0
    %139 = vmatpush2.msra.mxu0 0.0
    %140 = vmatprep.subr.mxu0 0.0
    %141 = vmatpush2.msra.mxu0 0.0
    %142 = vmatprep.subr.mxu0 0.0
    %143 = vmatpush2.msra.mxu0 0.0
    %144 = vmatprep.subr.mxu0 0.0
    %145 = vmatpush2.msra.mxu0 0.0
    %146 = vmatprep.subr.mxu0 0.0
    %147 = vmatpush2.msra.mxu0 0.0
    %148 = vmatprep.subr.mxu0 0.0
    %149 = vmatpush2.msra.mxu0 0.0
    %150 = vmatprep.subr.mxu0 0.0
    %151 = vmatpush2.msra.mxu0 0.0
    %152 = vmatprep.subr.mxu0 0.0
    %153 = vmatpush2.msra.mxu0 0.0
    %154 = vmatprep.subr.mxu0 0.0
    %155 = vmatpush2.msra.mxu0 0.0
    %156 = vmatprep.subr.mxu0 0.0
    %157 = vmatpush2.msra.mxu0 0.0
    %158 = vmatprep.subr.mxu0 0.0
    %159 = vmatpush2.msra.mxu0 0.0
    %160 = vmatprep.subr.mxu0 0.0
    %161 = vmatpush2.msra.mxu0 0.0
    %162 = vmatprep.subr.mxu0 0.0
    %163 = vmatpush2.msra.mxu0 0.0
    %164 = vmatprep.subr.mxu0 0.0
    %165 = vmatpush2.msra.mxu0 0.0
    %166 = vmatprep.subr.mxu0 0.0
    %167 = vmatpush2.msra.mxu0 0.0
    %168 = vmatprep.mubr.f32.mxu0 0.0
    %169 = vmatmul.mubr.f32.gmra.mxu0 %v93
    %v170 = vpop.f32.mrf.mxu0
    %v171 = vadd.f32 %v89, %v170
    %v172 = vpop.f32.mrf.mxu0
    %173 = vmatprep.mubr.f32.mxu0 0.0
    %174 = vmatmul.mubr.f32.gmra.mxu0 %v96
    %v175 = vpop.f32.mrf.mxu0
    %v176 = vadd.f32 %v89, %v175
    %v177 = vpop.f32.mrf.mxu0
    %178 = vmatprep.mubr.f32.mxu0 0.0
    %179 = vmatmul.mubr.f32.gmra.mxu0 %v99
    %v180 = vpop.f32.mrf.mxu0
    %v181 = vadd.f32 %v89, %v180
    %v182 = vpop.f32.mrf.mxu0
    %183 = vmatprep.mubr.f32.mxu0 0.0
    %184 = vmatmul.mubr.f32.gmra.mxu0 %v102
    %v185 = vpop.f32.mrf.mxu0
    %v186 = vadd.f32 %v89, %v185
    %v187 = vpop.f32.mrf.mxu0
    %188 = vdwg.mxu0
    %vm189 = vcmask 523264
    %v190 = vsel %vm189, %v171, 0.0
    %v191 = vsel %vm189, %v176, 0.0
    %v192 = vadd.f32 %v190, %v191
    %v193 = vsel %vm189, %v181, 0.0
    %v194 = vadd.f32 %v192, %v193
    %v195 = vsel %vm189, %v186, 0.0
    %v196 = vadd.f32 %v194, %v195
    %v197 = vrot.slane %v196, 4
    %v198 = vadd.f32 %v196, %v197
    %v199 = vrot.slane %v198, 2
    %v200 = vadd.f32 %v198, %v199
    %v201 = vrot.slane %v200, 1
    %v202 = vadd.f32 %v200, %v201
    %v203 = vrcp.pop 32.0
    %v204 = vmul.f32 %v202, %v203
    %v205 = vsub.f32 %v171, %v204
    %v206 = vsub.f32 %v176, %v204
    %v207 = vsub.f32 %v181, %v204
    %v208 = vsub.f32 %v186, %v204
    %v209 = vmul.f32 %v205, %v205
    %v210 = vmul.f32 %v206, %v206
    %v211 = vmul.f32 %v207, %v207
    %v212 = vmul.f32 %v208, %v208
    %v213 = vsel %vm189, %v209, 0.0
    %v214 = vsel %vm189, %v210, 0.0
    %v215 = vadd.f32 %v213, %v214
    %v216 = vsel %vm189, %v211, 0.0
    %v217 = vadd.f32 %v215, %v216
    %v218 = vsel %vm189, %v212, 0.0
    %v219 = vadd.f32 %v217, %v218
    %v220 = vrot.slane %v219, 4
    %v221 = vadd.f32 %v219, %v220
    %v222 = vrot.slane %v221, 2
    %v223 = vadd.f32 %v221, %v222
    %v224 = vrot.slane %v223, 1
    %v225 = vadd.f32 %v223, %v224
    %v226 = vmul.f32 %v225, %v203
    %v227 = vadd.f32 %v226, 1e-05
    %v228 = vrsqrt.pop %v227
    %v229 = vmul.f32 %v228, %v83
    %v230 = vlaneseq
    %v231 = vshrl.u32 %v230, 7
    %v232 = vsub.s32 0, %v231
    %v233 = vrot.slane %v229, %v232
    %v234 = vmul.f32 %v205, %v233
    %v235 = vmul.f32 %v206, %v233
    %v236 = vmul.f32 %v207, %v233
    %v237 = vmul.f32 %v208, %v233
    %v239 = vlaneseq
    %v240 = vshrl.u32 %v239, 7
    %v241 = vsub.s32 0, %v240
    %v242 = vrot.slane %v84, %v241
    %v244 = vadd.f32 %v234, %v242
    %v245 = vadd.f32 %v235, %v242
    %v246 = vadd.f32 %v236, %v242
    %v247 = vadd.f32 %v237, %v242
    %v248 = vmax.f32 %v244, 0.0
    %v249 = vmax.f32 %v245, 0.0
    %v250 = vmax.f32 %v246, 0.0
    %v251 = vmax.f32 %v247, 0.0
    %v252 = vld [vmem:[#allocation7] sm:$0xff]
    %v253 = vld [vmem:[#allocation7 + $0x8] sm:$0xff]
    %v254 = vld [vmem:[#allocation7 + $0x10] sm:$0xff]
    %v255 = vld [vmem:[#allocation7 + $0x18] sm:$0xff]
    %v256 = vld [vmem:[#allocation7 + $0x20] sm:$0xff]
    %v257 = vld [vmem:[#allocation7 + $0x28] sm:$0xff]
    %v258 = vld [vmem:[#allocation7 + $0x30] sm:$0xff]
    %v259 = vld [vmem:[#allocation7 + $0x38] sm:$0xff]
    %v260 = vld [vmem:[%s6] sm:$0x1]
    %v261 = vld [vmem:[%s7] sm:$0x1]
    %v262 = vld [vmem:[%s8] sm:$0x1]
    %v264 = vlaneseq
    %v265 = vshrl.u32 %v264, 7
    %v266 = vsub.s32 0, %v265
    %v267 = vrot.slane %v260, %v266
    %v270 = vsel %vm189, %v248, 0
    %v273 = vsel %vm189, %v249, 0
    %v276 = vsel %vm189, %v250, 0
    %v279 = vsel %vm189, %v251, 0
    %281 = vmatprep.subr.mxu0 0.0
    %282 = vmatpush1.msra.mxu0 0.0
    %283 = vmatprep.subr.mxu0 0.0
    %284 = vmatpush1.msra.mxu0 0.0
    %285 = vmatprep.subr.mxu0 0.0
    %286 = vmatpush1.msra.mxu0 0.0
    %287 = vmatprep.subr.mxu0 0.0
    %288 = vmatpush1.msra.mxu0 0.0
    %289 = vmatprep.subr.mxu0 0.0
    %290 = vmatpush1.msra.mxu0 0.0
    %291 = vmatprep.subr.mxu0 0.0
    %292 = vmatpush1.msra.mxu0 0.0
    %293 = vmatprep.subr.mxu0 0.0
    %294 = vmatpush1.msra.mxu0 0.0
    %295 = vmatprep.subr.mxu0 0.0
    %296 = vmatpush1.msra.mxu0 0.0
    %297 = vmatprep.subr.mxu0 0.0
    %298 = vmatpush1.msra.mxu0 %v259
    %299 = vmatprep.subr.mxu0 0.0
    %300 = vmatpush1.msra.mxu0 %v258
    %301 = vmatprep.subr.mxu0 0.0
    %302 = vmatpush1.msra.mxu0 %v257
    %303 = vmatprep.subr.mxu0 0.0
    %304 = vmatpush1.msra.mxu0 %v256
    %305 = vmatprep.subr.mxu0 0.0
    %306 = vmatpush1.msra.mxu0 %v255
    %307 = vmatprep.subr.mxu0 0.0
    %308 = vmatpush1.msra.mxu0 %v254
    %309 = vmatprep.subr.mxu0 0.0
    %310 = vmatpush1.msra.mxu0 %v253
    %311 = vmatprep.subr.mxu0 0.0
    %312 = vmatpush1.msra.mxu0 %v252
    %313 = vmatprep.subr.mxu0 0.0
    %314 = vmatpush2.msra.mxu0 0.0
    %315 = vmatprep.subr.mxu0 0.0
    %316 = vmatpush2.msra.mxu0 0.0
    %317 = vmatprep.subr.mxu0 0.0
    %318 = vmatpush2.msra.mxu0 0.0
    %319 = vmatprep.subr.mxu0 0.0
    %320 = vmatpush2.msra.mxu0 0.0
    %321 = vmatprep.subr.mxu0 0.0
    %322 = vmatpush2.msra.mxu0 0.0
    %323 = vmatprep.subr.mxu0 0.0
    %324 = vmatpush2.msra.mxu0 0.0
    %325 = vmatprep.subr.mxu0 0.0
    %326 = vmatpush2.msra.mxu0 0.0
    %327 = vmatprep.subr.mxu0 0.0
    %328 = vmatpush2.msra.mxu0 0.0
    %329 = vmatprep.subr.mxu0 0.0
    %330 = vmatpush2.msra.mxu0 0.0
    %331 = vmatprep.subr.mxu0 0.0
    %332 = vmatpush2.msra.mxu0 0.0
    %333 = vmatprep.subr.mxu0 0.0
    %334 = vmatpush2.msra.mxu0 0.0
    %335 = vmatprep.subr.mxu0 0.0
    %336 = vmatpush2.msra.mxu0 0.0
    %337 = vmatprep.subr.mxu0 0.0
    %338 = vmatpush2.msra.mxu0 0.0
    %339 = vmatprep.subr.mxu0 0.0
    %340 = vmatpush2.msra.mxu0 0.0
    %341 = vmatprep.subr.mxu0 0.0
    %342 = vmatpush2.msra.mxu0 0.0
    %343 = vmatprep.subr.mxu0 0.0
    %344 = vmatpush2.msra.mxu0 0.0
    %345 = vmatprep.mubr.f32.mxu0 0.0
    %346 = vmatmul.mubr.f32.gmra.mxu0 %v270
    %v347 = vpop.f32.mrf.mxu0
    %v348 = vadd.f32 %v267, %v347
    %v349 = vpop.f32.mrf.mxu0
    %350 = vmatprep.mubr.f32.mxu0 0.0
    %351 = vmatmul.mubr.f32.gmra.mxu0 %v273
    %v352 = vpop.f32.mrf.mxu0
    %v353 = vadd.f32 %v267, %v352
    %v354 = vpop.f32.mrf.mxu0
    %355 = vmatprep.mubr.f32.mxu0 0.0
    %356 = vmatmul.mubr.f32.gmra.mxu0 %v276
    %v357 = vpop.f32.mrf.mxu0
    %v358 = vadd.f32 %v267, %v357
    %v359 = vpop.f32.mrf.mxu0
    %360 = vmatprep.mubr.f32.mxu0 0.0
    %361 = vmatmul.mubr.f32.gmra.mxu0 %v279
    %v362 = vpop.f32.mrf.mxu0
    %v363 = vadd.f32 %v267, %v362
    %v364 = vpop.f32.mrf.mxu0
    %365 = vdwg.mxu0
    %v366 = vadd.f32 %v348, %v353
    %v367 = vadd.f32 %v366, %v358
    %v368 = vadd.f32 %v367, %v363
    %v369 = vrot.slane %v368, 4
    %v370 = vadd.f32 %v368, %v369
    %v371 = vrot.slane %v370, 2
    %v372 = vadd.f32 %v370, %v371
    %v373 = vrot.slane %v372, 1
    %v374 = vadd.f32 %v372, %v373
    %v375 = vmul.f32 %v374, %v203
    %v376 = vsub.f32 %v348, %v375
    %v377 = vsub.f32 %v353, %v375
    %v378 = vsub.f32 %v358, %v375
    %v379 = vsub.f32 %v363, %v375
    %v380 = vmul.f32 %v376, %v376
    %v381 = vmul.f32 %v377, %v377
    %v382 = vmul.f32 %v378, %v378
    %v383 = vmul.f32 %v379, %v379
    %v384 = vadd.f32 %v380, %v381
    %v385 = vadd.f32 %v384, %v382
    %v386 = vadd.f32 %v385, %v383
    %v387 = vrot.slane %v386, 4
    %v388 = vadd.f32 %v386, %v387
    %v389 = vrot.slane %v388, 2
    %v390 = vadd.f32 %v388, %v389
    %v391 = vrot.slane %v390, 1
    %v392 = vadd.f32 %v390, %v391
    %v393 = vmul.f32 %v392, %v203
    %v394 = vadd.f32 %v393, 1e-05
    %v395 = vrsqrt.pop %v394
    %v396 = vmul.f32 %v395, %v261
    %v397 = vlaneseq
    %v398 = vshrl.u32 %v397, 7
    %v399 = vsub.s32 0, %v398
    %v400 = vrot.slane %v396, %v399
    %v401 = vmul.f32 %v376, %v400
    %v402 = vmul.f32 %v377, %v400
    %v403 = vmul.f32 %v378, %v400
    %v404 = vmul.f32 %v379, %v400
    %v406 = vlaneseq
    %v407 = vshrl.u32 %v406, 7
    %v408 = vsub.s32 0, %v407
    %v409 = vrot.slane %v262, %v408
    %v411 = vadd.f32 %v401, %v409
    %v412 = vadd.f32 %v402, %v409
    %v413 = vadd.f32 %v403, %v409
    %v414 = vadd.f32 %v404, %v409
    %v415 = vmax.f32 %v411, 0.0
    %v416 = vmax.f32 %v412, 0.0
    %v417 = vmax.f32 %v413, 0.0
    %v418 = vmax.f32 %v414, 0.0
    %419 = vst [vmem:[#allocation8] sm:$0xff] %v415
    %420 = vst [vmem:[#allocation8 + $0x8] sm:$0xff] %v416
    %421 = vst [vmem:[#allocation8 + $0x10] sm:$0xff] %v417
    %422 = vst [vmem:[#allocation8 + $0x18] sm:$0xff] %v418
    // Predicated region
    $region50: #{tpu_custom_call.1} parent=1 // pred_check
      _
    $region51: #{tpu_custom_call.1} parent=1 // pred_check_branch
      %424 = sbr.rel (0) target = $region53
    $region52: #{tpu_custom_call.1} parent=1 // pred_region
      %s426 = ssub.s32 512, 512
      %427 = vsyncadd [#allocation4], %s426
      %s428 = sshll.u32 [#allocation8], 4
      %s429 = int_to_ptr.vmem [resolvable:$true] %s428
      %434 = dma.vmem_to_hbm [thread:$0]  %s429, 512, %s9, [#allocation4], 128, 128, 8
    $region53: #{tpu_custom_call.1} parent=1 // pred_fallthru
      _
    // Predicated region
    $region54: #{tpu_custom_call.1} parent=1 // pred_check
      _
    $region55: #{tpu_custom_call.1} parent=1 // pred_check_branch
      %436 = sbr.rel (0) target = $region57
    $region56: #{tpu_custom_call.1} parent=1 // pred_region
      %437 = dma.done [#allocation4], 512
    $region57: #{tpu_custom_call.1} parent=1 // pred_fallthru
      _
    %438 = vsyncpa [#allocation3], 1
    %439 = vsyncpa [#allocation6], 1
    %440 = vsyncpa [#allocation4], 1

</llo_original>
